<compile_context>
chip_gen: v7x
topology: tpu7x:2x2x1
jax: 0.10.0
libtpu: 0.0.40
codegen_flags: <defaults>
</compile_context>

<pallas_src>
import functools
import math

import jax
import jax.numpy as jnp
from jax.experimental import pallas as pl
from jax.experimental.pallas import tpu as pltpu


def _round_up(a, b):
    return (a + b - 1) // b * b


def label_smoothing_kernel(x_ref, tgt_ref, td_ref, part_ref, *,
                           padding_idx, confidence, base,
                           log_conf, log_base, actual_n, actual_v):
    i = pl.program_id(0)            # row-tile index   (parallel)
    j = pl.program_id(1)            # vocab-tile index (serial reduction)
    nj = pl.num_programs(1)
    del nj  # (kept for clarity; finalize is implicit via output residency)

    # Per-row-tile loss accumulator lives in the revisited output block:
    # its block index depends only on i, so it stays resident across j and is
    # written back to HBM exactly once per row tile.
    @pl.when(j == 0)
    def _():
        part_ref[...] = jnp.zeros_like(part_ref)

    x = x_ref[...]                  # (TN, TV) f32 log-probs
    tgt = tgt_ref[...]              # (TN, 1)  int32 labels
    tn, tv = x.shape

    rows = i * tn + jax.lax.broadcasted_iota(jnp.int32, (tn, tv), 0)
    cols = j * tv + jax.lax.broadcasted_iota(jnp.int32, (tn, tv), 1)

    in_bounds = (rows < actual_n) & (cols < actual_v)   # mask padded edges
    row_valid = tgt != padding_idx                      # (TN, 1), broadcasts
    col_valid = cols != padding_idx
    is_tgt = cols == tgt
    valid = in_bounds & row_valid & col_valid

    # Smoothed target distribution.
    td = jnp.where(valid,
                   jnp.where(is_tgt, confidence, base),
                   0.0).astype(jnp.float32)
    td_ref[...] = td

    # KLDivLoss(sum): td * (log(td) - x). td only takes {confidence, base, 0},
    # so log(td) is a compile-time constant (no EUP log, no safe_td select).
    contrib = jnp.where(
        valid,
        jnp.where(is_tgt,
                  confidence * (log_conf - x),
                  base * (log_base - x)),
        0.0)
    part_ref[...] += jnp.sum(contrib)   # scalar partial broadcast into block


def label_smoothing(x, target, *, size, padding_idx, smoothing,
                    tile_n=512, tile_v=2048):
    """x: (N, size) float32 log-probs, target: (N,) int. Returns (loss, true_dist)."""
    N, V = x.shape
    assert V == size

    confidence = 1.0 - smoothing
    base = smoothing / (size - 2)
    log_conf = math.log(confidence) if confidence > 0.0 else 0.0
    log_base = math.log(base) if base > 0.0 else 0.0

    tgt2d = target.reshape(N, 1).astype(jnp.int32)

    # Pad to (8, 128) multiples so every block is lane/sublane aligned;
    # padded rows/cols are masked out inside the kernel.
    n_pad = _round_up(N, 8)
    v_pad = _round_up(V, 128)
    if (n_pad, v_pad) != (N, V):
        x = jnp.pad(x, ((0, n_pad - N), (0, v_pad - V)))
        tgt2d = jnp.pad(tgt2d, ((0, n_pad - N), (0, 0)),
                        constant_values=padding_idx)

    tn = min(_round_up(tile_n, 8), n_pad)
    tv = min(_round_up(tile_v, 128), v_pad)
    nt = -(-n_pad // tn)
    vt = -(-v_pad // tv)

    kernel = functools.partial(
        label_smoothing_kernel,
        padding_idx=padding_idx, confidence=confidence, base=base,
        log_conf=log_conf, log_base=log_base, actual_n=N, actual_v=V)

    cost = pl.CostEstimate(
        flops=5 * N * V,
        transcendentals=0,
        bytes_accessed=2 * n_pad * v_pad * 4 + n_pad * 4)

    true_dist, partials = pl.pallas_call(
        kernel,
        grid=(nt, vt),
        in_specs=[
            pl.BlockSpec((tn, tv), lambda i, j: (i, j)),    # x tile
            pl.BlockSpec((tn, 1), lambda i, j: (i, 0)),     # target rows
        ],
        out_specs=[
            pl.BlockSpec((tn, tv), lambda i, j: (i, j)),        # true_dist tile
            pl.BlockSpec((1, 8, 128), lambda i, j: (i, 0, 0)),  # per-row-tile loss
        ],
        out_shape=[
            jax.ShapeDtypeStruct((n_pad, v_pad), jnp.float32),
            jax.ShapeDtypeStruct((nt, 8, 128), jnp.float32),
        ],
        compiler_params=pltpu.CompilerParams(
            dimension_semantics=("parallel", "arbitrary"),
            vmem_limit_bytes=48 * 1024 * 1024),
        cost_estimate=cost,
    )(x, tgt2d)

    loss = jnp.sum(partials[:, 0, 0])          # tiny final reduction in XLA
    return loss, true_dist[:N, :V]


def _reference(x, target, *, size, padding_idx, smoothing):
    confidence = 1.0 - smoothing
    N, V = x.shape
    td = jnp.full((N, V), smoothing / (size - 2), dtype=jnp.float32)
    td = td.at[jnp.arange(N), target].set(confidence)
    td = td.at[:, padding_idx].set(0.0)
    td = jnp.where((target == padding_idx)[:, None], 0.0, td)
    contrib = jnp.where(td > 0, td * (jnp.log(jnp.where(td > 0, td, 1.0)) - x), 0.0)
    return jnp.sum(contrib), td


if __name__ == "__main__":
    key = jax.random.PRNGKey(0)
    size = 250          # vocab size (x.size(1) == size); not a 128 multiple on purpose
    padding_idx = 0
    smoothing = 0.1
    batch, seq = 4, 7
    N = batch * seq     # 28 flattened tokens (not an 8 multiple on purpose)

    k_x, k_t = jax.random.split(key)
    logits = jax.random.normal(k_x, (N, size), dtype=jnp.float32)
    x = jax.nn.log_softmax(logits, axis=-1)          # KLDivLoss expects log-probs
    target = jax.random.randint(k_t, (N,), 1, size, dtype=jnp.int32)
    target = target.at[3].set(padding_idx)           # ensure padded rows exist
    target = target.at[17].set(padding_idx)

    # Small tiles so the 2-D (parallel rows, serial vocab) grid is exercised.
    loss, true_dist = label_smoothing(
        x, target, size=size, padding_idx=padding_idx, smoothing=smoothing,
        tile_n=16, tile_v=128)
    loss = jax.block_until_ready(loss)
    true_dist = jax.block_until_ready(true_dist)

    ref_loss, ref_td = _reference(
        x, target, size=size, padding_idx=padding_idx, smoothing=smoothing)
    assert true_dist.shape == ref_td.shape, "true_dist shape mismatch"
    assert jnp.allclose(true_dist, ref_td, atol=1e-6), "true_dist mismatch"
    assert jnp.allclose(loss, ref_loss, rtol=1e-5, atol=1e-4), "loss mismatch"

    print("KERNEL_OK")
</pallas_src>

<mosaic_0001>
module attributes {stable_mosaic.version = 11 : i64} {
  func.func @label_smoothing_kernel(%arg0: i32, %arg1: i32, %arg2: memref<16x128xf32, #tpu.memory_space<vmem>>, %arg3: memref<16x1xi32, #tpu.memory_space<vmem>>, %arg4: memref<16x128xf32, #tpu.memory_space<vmem>>, %arg5: memref<1x8x128xf32, #tpu.memory_space<vmem>>) attributes {dimension_semantics = [#tpu.dimension_semantics<parallel>, #tpu.dimension_semantics<arbitrary>], iteration_bounds = array<i64: 2, 2>, scalar_prefetch = 0 : i64, scratch_operands = 0 : i64, tpu.core_type = #tpu.core_type<tc>, window_params = [{transform_indices = @transform_0, window_bounds = array<i64: 16, 128>}, {transform_indices = @transform_1, window_bounds = array<i64: 16, 1>}, {transform_indices = @transform_2, window_bounds = array<i64: 16, 128>}, {transform_indices = @transform_3, window_bounds = array<i64: 1, 8, 128>}]} {
    %c0_i32 = arith.constant 0 : i32
    %0 = arith.cmpi eq, %arg1, %c0_i32 : i32
    %1 = arith.extui %0 : i1 to i32
    %c0_i32_0 = arith.constant 0 : i32
    %2 = arith.cmpi ne, %1, %c0_i32_0 : i32
    scf.if %2 {
      %cst_22 = arith.constant 0.000000e+00 : f32
      %52 = vector.broadcast %cst_22 : f32 to vector<1x8x128xf32>
      %c0_23 = arith.constant 0 : index
      %c0_24 = arith.constant 0 : index
      %c0_25 = arith.constant 0 : index
      %53 = vector.load %arg5[%c0_23, %c0_24, %c0_25] : memref<1x8x128xf32, #tpu.memory_space<vmem>>, vector<1x8x128xf32>
      tpu.vector_store %arg5[%c0_23, %c0_24, %c0_25], %52 {strides = array<i32>} : memref<1x8x128xf32, #tpu.memory_space<vmem>>, vector<1x8x128xf32>,
    } else {
    }
    %c0 = arith.constant 0 : index
    %c0_1 = arith.constant 0 : index
    %3 = vector.load %arg2[%c0, %c0_1] : memref<16x128xf32, #tpu.memory_space<vmem>>, vector<16x128xf32>
    %c0_2 = arith.constant 0 : index
    %c0_3 = arith.constant 0 : index
    %4 = vector.load %arg3[%c0_2, %c0_3] : memref<16x1xi32, #tpu.memory_space<vmem>>, vector<16x1xi32>
    %c16_i32 = arith.constant 16 : i32
    %5 = arith.muli %arg0, %c16_i32 : i32
    %6 = tpu.iota {dimensions = array<i32: 0>} : vector<16x128xi32>
    %7 = vector.broadcast %5 : i32 to vector<16x128xi32>
    %8 = arith.addi %7, %6 : vector<16x128xi32>
    %c128_i32 = arith.constant 128 : i32
    %9 = arith.muli %arg1, %c128_i32 : i32
    %10 = tpu.iota {dimensions = array<i32: 1>} : vector<16x128xi32>
    %11 = vector.broadcast %9 : i32 to vector<16x128xi32>
    %12 = arith.addi %11, %10 : vector<16x128xi32>
    %c28_i32 = arith.constant 28 : i32
    %13 = vector.broadcast %c28_i32 : i32 to vector<16x128xi32>
    %14 = arith.cmpi slt, %8, %13 : vector<16x128xi32>
    %c250_i32 = arith.constant 250 : i32
    %15 = vector.broadcast %c250_i32 : i32 to vector<16x128xi32>
    %16 = arith.cmpi slt, %12, %15 : vector<16x128xi32>
    %17 = arith.andi %14, %16 : vector<16x128xi1>
    %c0_i32_4 = arith.constant 0 : i32
    %18 = vector.broadcast %c0_i32_4 : i32 to vector<16x1xi32>
    %19 = arith.cmpi ne, %4, %18 : vector<16x1xi32>
    %c0_i32_5 = arith.constant 0 : i32
    %20 = vector.broadcast %c0_i32_5 : i32 to vector<16x128xi32>
    %21 = arith.cmpi ne, %12, %20 : vector<16x128xi32>
    %22 = vector.broadcast %4 : vector<16x1xi32> to vector<16x128xi32>
    %23 = arith.cmpi eq, %12, %22 : vector<16x128xi32>
    %24 = vector.broadcast %19 : vector<16x1xi1> to vector<16x128xi1>
    %25 = arith.andi %17, %24 : vector<16x128xi1>
    %26 = arith.andi %25, %21 : vector<16x128xi1>
    %cst = arith.constant 0.899999976 : f32
    %cst_6 = arith.constant 4.032258E-4 : f32
    %27 = vector.broadcast %cst : f32 to vector<16x128xf32>
    %28 = vector.broadcast %cst_6 : f32 to vector<16x128xf32>
    %29 = arith.select %23, %27, %28 : vector<16x128xi1>, vector<16x128xf32>
    %cst_7 = arith.constant 0.000000e+00 : f32
    %30 = vector.broadcast %cst_7 : f32 to vector<16x128xf32>
    %31 = arith.select %26, %29, %30 : vector<16x128xi1>, vector<16x128xf32>
    %c0_8 = arith.constant 0 : index
    %c0_9 = arith.constant 0 : index
    %32 = vector.load %arg4[%c0_8, %c0_9] : memref<16x128xf32, #tpu.memory_space<vmem>>, vector<16x128xf32>
    tpu.vector_store %arg4[%c0_8, %c0_9], %31 {strides = array<i32>} : memref<16x128xf32, #tpu.memory_space<vmem>>, vector<16x128xf32>,
    %cst_10 = arith.constant -0.105360515 : f32
    %33 = vector.broadcast %cst_10 : f32 to vector<16x128xf32>
    %34 = arith.subf %33, %3 : vector<16x128xf32>
    %cst_11 = arith.constant 0.899999976 : f32
    %35 = vector.broadcast %cst_11 : f32 to vector<16x128xf32>
    %36 = arith.mulf %35, %34 : vector<16x128xf32>
    %cst_12 = arith.constant -7.81601381 : f32
    %37 = vector.broadcast %cst_12 : f32 to vector<16x128xf32>
    %38 = arith.subf %37, %3 : vector<16x128xf32>
    %cst_13 = arith.constant 4.032258E-4 : f32
    %39 = vector.broadcast %cst_13 : f32 to vector<16x128xf32>
    %40 = arith.mulf %39, %38 : vector<16x128xf32>
    %41 = arith.select %23, %36, %40 : vector<16x128xi1>, vector<16x128xf32>
    %cst_14 = arith.constant 0.000000e+00 : f32
    %42 = vector.broadcast %cst_14 : f32 to vector<16x128xf32>
    %43 = arith.select %26, %41, %42 : vector<16x128xi1>, vector<16x128xf32>
    %c0_15 = arith.constant 0 : index
    %c0_16 = arith.constant 0 : index
    %c0_17 = arith.constant 0 : index
    %44 = vector.load %arg5[%c0_15, %c0_16, %c0_17] : memref<1x8x128xf32, #tpu.memory_space<vmem>>, vector<1x8x128xf32>
    %45 = vector.shape_cast %43 : vector<16x128xf32> to vector<1x16x128xf32>
    %cst_18 = arith.constant dense<0.000000e+00> : vector<1xf32>
    %46 = vector.multi_reduction <add>, %45, %cst_18 [1, 2] : vector<1x16x128xf32> to vector<1xf32>
    %47 = vector.shape_cast %46 : vector<1xf32> to vector<1x1x1xf32>
    %48 = vector.extract %47[0, 0, 0] : f32 from vector<1x1x1xf32>
    %49 = vector.broadcast %48 : f32 to vector<1x8x128xf32>
    %50 = arith.addf %44, %49 : vector<1x8x128xf32>
    %c0_19 = arith.constant 0 : index
    %c0_20 = arith.constant 0 : index
    %c0_21 = arith.constant 0 : index
    %51 = vector.load %arg5[%c0_19, %c0_20, %c0_21] : memref<1x8x128xf32, #tpu.memory_space<vmem>>, vector<1x8x128xf32>
    tpu.vector_store %arg5[%c0_19, %c0_20, %c0_21], %50 {strides = array<i32>} : memref<1x8x128xf32, #tpu.memory_space<vmem>>, vector<1x8x128xf32>,
    return
  }
  func.func @transform_0(%arg0: i32, %arg1: i32) -> (i32, i32) {
    %c0_i32 = arith.constant 0 : i32
    return %arg0, %arg1 : i32, i32
  }
  func.func @transform_1(%arg0: i32, %arg1: i32) -> (i32, i32) {
    %c0_i32 = arith.constant 0 : i32
    %c0_i32_0 = arith.constant 0 : i32
    return %arg0, %c0_i32 : i32, i32
  }
  func.func @transform_2(%arg0: i32, %arg1: i32) -> (i32, i32) {
    %c0_i32 = arith.constant 0 : i32
    return %arg0, %arg1 : i32, i32
  }
  func.func @transform_3(%arg0: i32, %arg1: i32) -> (i32, i32, i32) {
    %c0_i32 = arith.constant 0 : i32
    %c0_i32_0 = arith.constant 0 : i32
    %c0_i32_1 = arith.constant 0 : i32
    return %arg0, %c0_i32, %c0_i32_0 : i32, i32, i32
  }
}

</mosaic_0001>

<llo_original>
// kernel: tpu_custom_call.1
$region0: #{tpu_custom_call.1}
  #allocation0 [shape = 'u32[]', space=smem, size = 0x4, offset = 0x4, fixed_abs, tag = 'smem constant byte address 0x4 - core index']
  #allocation1 [shape = 'u32[144,128]{1,0:T(1,128)}', space=vmem, size = 0x12000, scoped, tag = 'internal scratch']
  %s0 = inlined_call_operand.hbm [shape: f32[32,256], index: 0, kind: input, shape index: {}]
  %s1 = inlined_call_operand.vmem [shape: s32[32,1], index: 1, kind: input, shape index: {}]
  %s2 = inlined_call_operand.hbm [shape: f32[32,256], index: 2, kind: output, shape index: {0}]
  %s3 = inlined_call_operand.hbm [shape: f32[2,8,128], index: 3, kind: output, shape index: {1}]
  %4 = xla_tuple %s2, %s3
  %s5 = sld [smem:[#allocation0]]
  $region57: #{tpu_custom_call.1} parent=0
    _
  %s7 = ssub.s32 1, %s5
  %s8 = scalar_select 0, %s7, %s5
  $region1: #{tpu_custom_call.1} parent=0
    #allocation2 [shape = 'u8[16384]{0}', space=vmem, size = 0x4000, scoped, tag = 'input window, operand 0']
    #allocation3 [shape = 's32[2]{0}', space=sflag, size = 0x8, scoped, tag = 'scoped memory for tpu_custom_call.1']
    #allocation4 [shape = 's32[2]{0}', space=sflag, size = 0x8, scoped, tag = 'scoped memory for tpu_custom_call.1']
    #allocation5 [shape = 'u8[16384]{0}', space=vmem, size = 0x4000, scoped, tag = 'output window, operand 0']
    #allocation6 [shape = 'u8[8192]{0}', space=vmem, size = 0x2000, scoped, tag = 'output window, operand 1']
    #allocation7 [shape = 's32[2]{0}', space=sflag, size = 0x8, scoped, tag = 'scoped memory for tpu_custom_call.1']
    %9 = vsyncpa [#allocation3], 0
    %s10 = scalar_lea.sflag [#allocation3], 1
    %11 = vsyncpa %s10, 0
    %12 = vsyncpa [#allocation4], 0
    %s13 = scalar_lea.sflag [#allocation4], 1
    %14 = vsyncpa %s13, 0
    %15 = vsyncpa [#allocation7], 0
    %s16 = scalar_lea.sflag [#allocation7], 1
    %17 = vsyncpa %s16, 0
    loop: start=0, step=1, limit=6
    $region2: #{tpu_custom_call.1} parent=1 // loop_pre_header
      _
    $region3: #{tpu_custom_call.1} parent=1 // loop_header
      %s19 = sphi 0, %s23
      %p20 = scmp.ge.s32.totalorder %s19, 6
      %s26 = sphi 0, %s38
      %s27 = sphi 0, %s34
      %s28 = sphi 0, %s26
      %s29 = sphi 0, %s27
      %s30 = sphi 0, %s28
      %s31 = sphi 0, %s29
      %s43 = sphi 0, %s45
      %s46 = sphi 0, %s43
      %s47 = sphi 0, %s46
      %s63 = sphi 0, %s47
      %s69 = sphi 0, %s71
      %s72 = sphi 0, %s69
      %s73 = sphi 0, %s72
      %s89 = sphi 0, %s73
      %s97 = sphi 0, %s99
      %s100 = sphi 0, %s97
      %s101 = sphi 0, %s100
      %s117 = sphi 0, %s101
      %s123 = sphi 0, %s125
      %s126 = sphi 0, %s123
      %s127 = sphi 0, %s126
      %s143 = sphi 0, %s127
    $region4: #{tpu_custom_call.1} parent=1 // loop_header_branch
      %22 = sbr.rel (%p20) target = $region8
    $region5: #{tpu_custom_call.1} parent=1 // loop_body
      %s24 = ssub.s32 %s19, 1
      %s25 = ssub.s32 %s19, 2
      %s32 = sadd.s32 1, %s27
      %p33 = scmp.ge.s32.totalorder %s32, 2
      %s34 = scalar_select %p33, 0, %s32
      %s35 = sadd.s32 1, %s26
      %s36 = scalar_select %p33, %s35, %s26
      %p37 = scmp.ge.s32.totalorder %s36, 2
      %s38 = scalar_select %p37, 0, %s36
      %s39 = ssub.s32 %s26, %s38
      %s40 = ssub.s32 %s27, %s34
      %s41 = sor.u32 %s39, %s40
      %p42 = scmp.eq.s32.totalorder %s41, 0
      %s44 = sadd.s32 %s43, 1
      %s45 = scalar_select %p42, %s43, %s44
      %p48 = pneg %p42
      %p49 = scmp.eq.s32.totalorder %s19, 3
      %p50 = por %p48, %p49
      %p51 = scmp.ne.s32.totalorder %s43, %s46
      %p52 = scmp.eq.s32.totalorder %s19, 0
      %p53 = por %p51, %p52
      %p54 = scmp.ne.s32.totalorder %s43, %s46
      %p55 = scmp.eq.s32.totalorder %s24, 3
      %p56 = por %p54, %p55
      %p57 = scmp.ne.s32.totalorder %s46, %s47
      %p58 = scmp.eq.s32.totalorder %s24, 0
      %p59 = por %p57, %p58
      %p60 = scmp.ne.s32.totalorder %s46, %s47
      %p61 = scmp.eq.s32.totalorder %s25, 3
      %p62 = por %p60, %p61
      %p64 = scmp.ne.s32.totalorder %s47, %s63
      %p65 = scmp.eq.s32.totalorder %s25, 0
      %p66 = por %p64, %p65
      %s67 = ssub.s32 %s26, %s38
      %p68 = scmp.eq.s32.totalorder %s67, 0
      %s70 = sadd.s32 %s69, 1
      %s71 = scalar_select %p68, %s69, %s70
      %p74 = pneg %p68
      %p75 = scmp.eq.s32.totalorder %s19, 3
      %p76 = por %p74, %p75
      %p77 = scmp.ne.s32.totalorder %s69, %s72
      %p78 = scmp.eq.s32.totalorder %s19, 0
      %p79 = por %p77, %p78
      %p80 = scmp.ne.s32.totalorder %s69, %s72
      %p81 = scmp.eq.s32.totalorder %s24, 3
      %p82 = por %p80, %p81
      %p83 = scmp.ne.s32.totalorder %s72, %s73
      %p84 = scmp.eq.s32.totalorder %s24, 0
      %p85 = por %p83, %p84
      %p86 = scmp.ne.s32.totalorder %s72, %s73
      %p87 = scmp.eq.s32.totalorder %s25, 3
      %p88 = por %p86, %p87
      %p90 = scmp.ne.s32.totalorder %s73, %s89
      %p91 = scmp.eq.s32.totalorder %s25, 0
      %p92 = por %p90, %p91
      %s93 = ssub.s32 %s26, %s38
      %s94 = ssub.s32 %s27, %s34
      %s95 = sor.u32 %s93, %s94
      %p96 = scmp.eq.s32.totalorder %s95, 0
      %s98 = sadd.s32 %s97, 1
      %s99 = scalar_select %p96, %s97, %s98
      %p102 = pneg %p96
      %p103 = scmp.eq.s32.totalorder %s19, 3
      %p104 = por %p102, %p103
      %p105 = scmp.ne.s32.totalorder %s97, %s100
      %p106 = scmp.eq.s32.totalorder %s19, 0
      %p107 = por %p105, %p106
      %p108 = scmp.ne.s32.totalorder %s97, %s100
      %p109 = scmp.eq.s32.totalorder %s24, 3
      %p110 = por %p108, %p109
      %p111 = scmp.ne.s32.totalorder %s100, %s101
      %p112 = scmp.eq.s32.totalorder %s24, 0
      %p113 = por %p111, %p112
      %p114 = scmp.ne.s32.totalorder %s100, %s101
      %p115 = scmp.eq.s32.totalorder %s25, 3
      %p116 = por %p114, %p115
      %p118 = scmp.ne.s32.totalorder %s101, %s117
      %p119 = scmp.eq.s32.totalorder %s25, 0
      %p120 = por %p118, %p119
      %s121 = ssub.s32 %s26, %s38
      %p122 = scmp.eq.s32.totalorder %s121, 0
      %s124 = sadd.s32 %s123, 1
      %s125 = scalar_select %p122, %s123, %s124
      %p128 = pneg %p122
      %p129 = scmp.eq.s32.totalorder %s19, 3
      %p130 = por %p128, %p129
      %p131 = scmp.ne.s32.totalorder %s123, %s126
      %p132 = scmp.eq.s32.totalorder %s19, 0
      %p133 = por %p131, %p132
      %p134 = scmp.ne.s32.totalorder %s123, %s126
      %p135 = scmp.eq.s32.totalorder %s24, 3
      %p136 = por %p134, %p135
      %p137 = scmp.ne.s32.totalorder %s126, %s127
      %p138 = scmp.eq.s32.totalorder %s24, 0
      %p139 = por %p137, %p138
      %p140 = scmp.ne.s32.totalorder %s126, %s127
      %p141 = scmp.eq.s32.totalorder %s25, 3
      %p142 = por %p140, %p141
      %p144 = scmp.ne.s32.totalorder %s127, %s143
      %p145 = scmp.eq.s32.totalorder %s25, 0
      %p146 = por %p144, %p145
      %p147 = scmp.le.s32.totalorder 1, %s19
      %p148 = scmp.lt.s32.totalorder %s19, 5
      %p149 = pnand %p147, %p148
      %p150 = pneg %p149
      // Predicated region
      $region9: #{tpu_custom_call.1} parent=5 // pred_check
        _
      $region10: #{tpu_custom_call.1} parent=5 // pred_check_branch
        %152 = sbr.rel (%p149) target = $region12
      $region11: #{tpu_custom_call.1} parent=5 // pred_region
        %s153 = ssub.s32 %s19, 1
      $region12: #{tpu_custom_call.1} parent=5 // pred_fallthru
        _
      %p154 = scmp.lt.s32.totalorder %s19, 4
      // Predicated region
      $region13: #{tpu_custom_call.1} parent=5 // pred_check
        %p155 = pneg %p154
      $region14: #{tpu_custom_call.1} parent=5 // pred_check_branch
        %157 = sbr.rel (%p155) target = $region16
      $region15: #{tpu_custom_call.1} parent=5 // pred_region
        // Predicated region
        $region17: #{tpu_custom_call.1} parent=15 // pred_check
          %p158 = pneg %p53
        $region18: #{tpu_custom_call.1} parent=15 // pred_check_branch
          %160 = sbr.rel (%p158) target = $region20
        $region19: #{tpu_custom_call.1} parent=15 // pred_region
          %s161 = sand.u32 %s43, 1
          %s162 = scalar_lea.sflag [#allocation3], %s161
          %s163 = sand.u32 %s43, 1
          %s164 = smul.addr %s163, 16
          %s165 = scalar_lea.vmem [#allocation2], %s164
          %s166 = smul.u32 2, %s26
          %s168 = ssub.s32 256, 256
          %169 = vsyncadd %s162, %s168
          %s170 = smul.addr %s166, 2
          %s171 = sadd.s32 %s27, %s170
          %s172 = smul.addr %s171, 128
          %s173 = scalar_lea.hbm %s0, %s172
          %s174 = sshll.u32 %s165, 4
          %s175 = int_to_ptr.vmem [resolvable:$true] %s174
          %180 = dma.hbm_to_vmem [thread:$0]  %s173, 256, %s175, %s162, 256, 128, 8
        $region20: #{tpu_custom_call.1} parent=15 // pred_fallthru
          _
        // Predicated region
        $region21: #{tpu_custom_call.1} parent=15 // pred_check
          %p181 = pneg %p79
        $region22: #{tpu_custom_call.1} parent=15 // pred_check_branch
          %183 = sbr.rel (%p181) target = $region24
        $region23: #{tpu_custom_call.1} parent=15 // pred_region
          %s184 = smul.u32 2, %s26
          %p185 = scmp.lt.s32.totalorder %s184, 3
          %s186 = scalar_select %p185, %s184, 3
          %s187 = smul.addr %s186, 8
          %s188 = scalar_lea.vmem %s1, %s187
          %s189 = smul.u32 2, %s26
        $region24: #{tpu_custom_call.1} parent=15 // pred_fallthru
          _
      $region16: #{tpu_custom_call.1} parent=5 // pred_fallthru
        _
      %p190 = scmp.le.s32.totalorder 1, %s19
      %p191 = scmp.lt.s32.totalorder %s19, 5
      %p192 = pnand %p190, %p191
      %p193 = pneg %p192
      // Predicated region
      $region25: #{tpu_custom_call.1} parent=5 // pred_check
        _
      $region26: #{tpu_custom_call.1} parent=5 // pred_check_branch
        %195 = sbr.rel (%p192) target = $region28
      $region27: #{tpu_custom_call.1} parent=5 // pred_region
        %s196 = ssub.s32 %s19, 1
        %s197 = sand.u32 %s46, 1
        %s198 = scalar_lea.sflag [#allocation3], %s197
        %s199 = sand.u32 %s46, 1
        %s200 = smul.addr %s199, 16
        %s201 = scalar_lea.vmem [#allocation2], %s200
        // Predicated region
        $region29: #{tpu_custom_call.1} parent=27 // pred_check
          %p202 = pneg %p59
        $region30: #{tpu_custom_call.1} parent=27 // pred_check_branch
          %204 = sbr.rel (%p202) target = $region32
        $region31: #{tpu_custom_call.1} parent=27 // pred_region
          %205 = dma.done %s198, 256
        $region32: #{tpu_custom_call.1} parent=27 // pred_fallthru
          _
        %s206 = sand.u32 %s46, 1
        %s207 = scalar_lea.sflag [#allocation3], %s206
        %s208 = sand.u32 %s46, 1
        %s209 = smul.addr %s208, 16
        %s210 = scalar_lea.vmem [#allocation2], %s209
        %p211 = pneg %p59
        %p212 = pneg %p56
        %s213 = smul.u32 2, %s28
        %p214 = scmp.lt.s32.totalorder %s213, 3
        %s215 = scalar_select %p214, %s213, 3
        %s216 = smul.addr %s215, 8
        %s217 = scalar_lea.vmem %s1, %s216
        %p218 = pneg %p85
        %p219 = pneg %p82
        %p220 = pneg %p113
        %p221 = pneg %p110
        %s222 = sand.u32 %s100, 1
        %s223 = scalar_lea.sflag [#allocation4], %s222
        %s224 = sand.u32 %s100, 1
        %s225 = smul.addr %s224, 16
        %s226 = scalar_lea.vmem [#allocation5], %s225
        %p227 = pneg %p139
        %p228 = pneg %p136
        %s229 = sand.u32 %s126, 1
        %s230 = scalar_lea.sflag [#allocation7], %s229
        %s231 = sand.u32 %s126, 1
        %s232 = smul.addr %s231, 8
        %s233 = scalar_lea.vmem [#allocation6], %s232
        %s234 = smul.u32 2, %s28
        %s235 = smul.u32 2, %s28
        %p236 = scmp.lt.s32.totalorder %s235, 3
        %s237 = scalar_select %p236, %s235, 3
        %s238 = smul.addr %s237, 8
        %s239 = scalar_lea.vmem %s1, %s238
        %s240 = smul.u32 2, %s28
        %s241 = smul.u32 2, %s28
        %p242 = scmp.eq.s32.totalorder %s29, 0
        // Predicated region
        $region33: #{tpu_custom_call.1} parent=27 // pred_check
          %p243 = pneg %p242
        $region34: #{tpu_custom_call.1} parent=27 // pred_check_branch
          %245 = sbr.rel (%p243) target = $region36
        $region35: #{tpu_custom_call.1} parent=27 // pred_region
          %246 = vst [vmem:[%s233] sm:$0xff] 0.0
        $region36: #{tpu_custom_call.1} parent=27 // pred_fallthru
          _
        %v247 = vld [vmem:[%s201] sm:$0xff]
        %v248 = vld [vmem:[%s201 + $0x8] sm:$0xff]
        %v249 = vld [vmem:[%s239] sm:$0xff]
        %v250 = vld [vmem:[%s239 + $0x8] sm:$0xff]
        %s251 = smul.u32 %s28, 16
        %v252 = vlaneseq
        %v253 = vshrl.u32 %v252, 7
        %v254 = vadd.s32 %v253, 8
        %v255 = vstv %s251
        %v256 = vadd.s32 %v255, %v253
        %v257 = vadd.s32 %v255, %v254
        %s258 = smul.u32 %s29, 128
        %v259 = vlaneseq
        %v260 = vand.u32 %v259, 127
        %v261 = vstv %s258
        %v262 = vadd.s32 %v261, %v260
        %vm263 = vcmp.lt.s32.totalorder %v256, 28
        %vm264 = vcmp.lt.s32.totalorder %v257, 28
        %vm265 = vcmp.lt.s32.totalorder %v262, 250
        %vm266 = vmand %vm263, %vm265
        %vm267 = vmand %vm264, %vm265
        %vm268 = vcmp.ne.s32.totalorder %v249, 0
        %vm269 = vcmp.ne.s32.totalorder %v250, 0
        %vm270 = vcmp.ne.s32.totalorder %v262, 0
        %271 = vset.pattern.permute.xlu0 0
        %272 = vperm.xlu0 %271, %v249
        %v273 = vpop.permute.xlu0 %272
        %274 = vset.pattern.permute.xlu0 0
        %275 = vperm.xlu0 %274, %v250
        %v276 = vpop.permute.xlu0 %275
        %vm277 = vcmp.eq.s32.totalorder %v262, %v273
        %vm278 = vcmp.eq.s32.totalorder %v262, %v276
        %v279 = vsel %vm268, 1, 0
        %v280 = vsel %vm269, 1, 0
        %281 = vset.pattern.permute.xlu0 0
        %282 = vperm.xlu0 %281, %v279
        %v283 = vpop.permute.xlu0 %282
        %284 = vset.pattern.permute.xlu0 0
        %285 = vperm.xlu0 %284, %v280
        %v286 = vpop.permute.xlu0 %285
        %vm287 = vcmp.eq.s32.totalorder %v283, 1
        %vm288 = vcmp.eq.s32.totalorder %v286, 1
        %vm289 = vmand %vm266, %vm287
        %vm290 = vmand %vm267, %vm288
        %vm291 = vmand %vm289, %vm270
        %vm292 = vmand %vm290, %vm270
        %v293 = vsel %vm277, 0.9, 0.0004032258
        %v294 = vsel %vm278, 0.9, 0.0004032258
        %v295 = vsel %vm291, %v293, 0.0
        %v296 = vsel %vm292, %v294, 0.0
        %297 = vst [vmem:[%s226] sm:$0xff] %v295
        %298 = vst [vmem:[%s226 + $0x8] sm:$0xff] %v296
        %v299 = vsub.f32 -0.105360515, %v247
        %v300 = vsub.f32 -0.105360515, %v248
        %v301 = vmul.f32 %v299, 0.9
        %v302 = vmul.f32 %v300, 0.9
        %v303 = vsub.f32 -7.816014, %v247
        %v304 = vsub.f32 -7.816014, %v248
        %v305 = vmul.f32 %v303, 0.0004032258
        %v306 = vmul.f32 %v304, 0.0004032258
        %v307 = vsel %vm277, %v301, %v305
        %v308 = vsel %vm278, %v302, %v306
        %v309 = vsel %vm291, %v307, 0.0
        %v310 = vsel %vm292, %v308, 0.0
        %v311 = vld [vmem:[%s233] sm:$0xff]
        %v312 = vadd.f32 %v309, %v310
        %313 = vadd.xlane.f32.xlu0 %v312
        %v314 = vpop.xlane.xlu0 %313
        %v315 = vrot.slane %v314, 4
        %v316 = vadd.f32 %v314, %v315
        %v317 = vrot.slane %v316, 2
        %v318 = vadd.f32 %v316, %v317
        %v319 = vrot.slane %v318, 1
        %v320 = vadd.f32 %v318, %v319
        %s321 = vtos %v320
        %v322 = vstv %s321
        %v323 = vadd.f32 %v311, %v322
        %324 = vst [vmem:[%s233] sm:$0xff] %v323
        %s325 = sand.u32 %s100, 1
        %s326 = scalar_lea.sflag [#allocation4], %s325
        %s327 = sand.u32 %s100, 1
        %s328 = smul.addr %s327, 16
        %s329 = scalar_lea.vmem [#allocation5], %s328
        %s330 = sand.u32 %s126, 1
        %s331 = scalar_lea.sflag [#allocation7], %s330
        %s332 = sand.u32 %s126, 1
        %s333 = smul.addr %s332, 8
        %s334 = scalar_lea.vmem [#allocation6], %s333
        // Predicated region
        $region37: #{tpu_custom_call.1} parent=27 // pred_check
          %p335 = pneg %p110
        $region38: #{tpu_custom_call.1} parent=27 // pred_check_branch
          %337 = sbr.rel (%p335) target = $region40
        $region39: #{tpu_custom_call.1} parent=27 // pred_region
          %s338 = smul.u32 2, %s28
          %s340 = ssub.s32 256, 256
          %341 = vsyncadd %s326, %s340
          %s342 = smul.addr %s338, 2
          %s343 = sadd.s32 %s29, %s342
          %s344 = smul.addr %s343, 128
          %s345 = scalar_lea.hbm %s2, %s344
          %s346 = sshll.u32 %s329, 4
          %s347 = int_to_ptr.vmem [resolvable:$true] %s346
          %352 = dma.vmem_to_hbm [thread:$0]  %s347, 256, %s345, %s326, 128, 256, 8
        $region40: #{tpu_custom_call.1} parent=27 // pred_fallthru
          _
        // Predicated region
        $region41: #{tpu_custom_call.1} parent=27 // pred_check
          %p353 = pneg %p136
        $region42: #{tpu_custom_call.1} parent=27 // pred_check_branch
          %355 = sbr.rel (%p353) target = $region44
        $region43: #{tpu_custom_call.1} parent=27 // pred_region
          %s357 = ssub.s32 128, 128
          %358 = vsyncadd %s331, %s357
          %s359 = smul.addr %s28, 128
          %s360 = scalar_lea.hbm %s3, %s359
          %s362 = sshll.u32 %s334, 4
          %s363 = int_to_ptr.vmem [resolvable:$true] %s362
          %365 = dma.vmem_to_hbm [thread:$0]  %s363, 128, %s360, %s331
        $region44: #{tpu_custom_call.1} parent=27 // pred_fallthru
          _
      $region28: #{tpu_custom_call.1} parent=5 // pred_fallthru
        _
      %p366 = scmp.le.s32.totalorder 2, %s19
      // Predicated region
      $region45: #{tpu_custom_call.1} parent=5 // pred_check
        %p367 = pneg %p366
      $region46: #{tpu_custom_call.1} parent=5 // pred_check_branch
        %369 = sbr.rel (%p367) target = $region48
      $region47: #{tpu_custom_call.1} parent=5 // pred_region
        %s370 = ssub.s32 %s19, 2
        // Predicated region
        $region49: #{tpu_custom_call.1} parent=47 // pred_check
          %p371 = pneg %p116
        $region50: #{tpu_custom_call.1} parent=47 // pred_check_branch
          %373 = sbr.rel (%p371) target = $region52
        $region51: #{tpu_custom_call.1} parent=47 // pred_region
          %s374 = sand.u32 %s101, 1
          %s375 = scalar_lea.sflag [#allocation4], %s374
          %s376 = sand.u32 %s101, 1
          %s377 = smul.addr %s376, 16
          %s378 = scalar_lea.vmem [#allocation5], %s377
          %379 = dma.done %s375, 256
        $region52: #{tpu_custom_call.1} parent=47 // pred_fallthru
          _
        // Predicated region
        $region53: #{tpu_custom_call.1} parent=47 // pred_check
          %p380 = pneg %p142
        $region54: #{tpu_custom_call.1} parent=47 // pred_check_branch
          %382 = sbr.rel (%p380) target = $region56
        $region55: #{tpu_custom_call.1} parent=47 // pred_region
          %s383 = sand.u32 %s127, 1
          %s384 = scalar_lea.sflag [#allocation7], %s383
          %s385 = sand.u32 %s127, 1
          %s386 = smul.addr %s385, 8
          %s387 = scalar_lea.vmem [#allocation6], %s386
          %388 = dma.done %s384, 128
        $region56: #{tpu_custom_call.1} parent=47 // pred_fallthru
          _
      $region48: #{tpu_custom_call.1} parent=5 // pred_fallthru
        _
    $region6: #{tpu_custom_call.1} parent=1 // loop_footer
      %s23 = sadd.s32 1, %s19
    $region7: #{tpu_custom_call.1} parent=1 // loop_footer_branch
      %18 = sbr.rel target = $region3
    $region8: #{tpu_custom_call.1} parent=1 // loop_exit
      _
    %389 = vsyncpa [#allocation3], 1
    %s390 = scalar_lea.sflag [#allocation3], 1
    %391 = vsyncpa %s390, 1
    %392 = vsyncpa [#allocation4], 1
    %s393 = scalar_lea.sflag [#allocation4], 1
    %394 = vsyncpa %s393, 1
    %395 = vsyncpa [#allocation7], 1
    %s396 = scalar_lea.sflag [#allocation7], 1
    %397 = vsyncpa %s396, 1

</llo_original>
